<compile_context>
chip_gen: v7x
topology: tpu7x:2x2x1
jax: 0.10.0
libtpu: 0.0.40
codegen_flags: <defaults>
</compile_context>

<pallas_src>
import functools

import jax
import jax.numpy as jnp
from jax.experimental import pallas as pl
from jax.experimental.pallas import tpu as pltpu


def _round_up(x: int, m: int) -> int:
    return ((x + m - 1) // m) * m


def _quant_kernel(x_ref, o_ref, *, B: int, step: float):
    # x_ref: (TB, N) float32, o_ref: (B, TB, N) float32 (bit-plane major).
    x = x_ref[...]
    q = jnp.round(x * step - 0.5)           # round-half-to-even == torch.round
    q = q.astype(jnp.int32) & 0xFF          # emulate .type(torch.uint8)
    for i in range(B):                      # static unroll; B is small
        bit = jnp.right_shift(q, B - 1 - i) & 1
        o_ref[i] = bit.astype(jnp.float32)  # lane-dense (TB, N) store


def quantization_layer(x: jnp.ndarray, B: int, *, batch_tile: int = 256) -> jnp.ndarray:
    """Forward of QuantizationLayer: x [batch, N] floats -> [batch, N*B] bit floats."""
    x = x.astype(jnp.float32)
    batch, N = x.shape
    step = float(2 ** B)

    # Batch tiling: multiple of 8 sublanes; pad batch to a whole number of tiles.
    tb = min(batch_tile, _round_up(batch, 8))
    padded = _round_up(batch, tb)
    if padded != batch:
        x = jnp.pad(x, ((0, padded - batch), (0, 0)))

    kernel = functools.partial(_quant_kernel, B=B, step=step)

    in_bytes = padded * N * 4
    out_bytes = B * padded * N * 4

    planes = pl.pallas_call(
        kernel,
        out_shape=jax.ShapeDtypeStruct((B, padded, N), jnp.float32),
        grid_spec=pltpu.PrefetchScalarGridSpec(
            num_scalar_prefetch=0,
            grid=(padded // tb,),
            in_specs=[pl.BlockSpec((tb, N), lambda b: (b, 0))],
            out_specs=pl.BlockSpec((B, tb, N), lambda b: (0, b, 0)),
        ),
        compiler_params=pltpu.CompilerParams(
            dimension_semantics=("parallel",),
            vmem_limit_bytes=32 * 1024 * 1024,
        ),
        cost_estimate=pl.CostEstimate(
            flops=5 * padded * N * B,
            transcendentals=0,
            bytes_accessed=in_bytes + out_bytes,
        ),
    )(x)

    planes = planes[:, :batch, :]            # (B, batch, N), drop batch padding
    # TODO(synk): the MSB-first bit interleave to (batch, N*B) is done as a
    # wrapper-side transpose+reshape (no clean lane-dilation primitive in Mosaic).
    return jnp.transpose(planes, (1, 2, 0)).reshape(batch, N * B)


def _reference(x: jnp.ndarray, B: int) -> jnp.ndarray:
    # Pure-JAX mirror of torch Quantization.forward / Num2Bit.
    x = x.astype(jnp.float32)
    step = 2 ** B
    q = jnp.round(x * step - 0.5).astype(jnp.int32) & 0xFF
    shifts = (B - 1 - jnp.arange(B, dtype=jnp.int32))[None, None, :]
    bits = (q[:, :, None] >> shifts) & 1
    return bits.reshape(x.shape[0], -1).astype(jnp.float32)


if __name__ == "__main__":
    key = jax.random.PRNGKey(0)
    B = 4
    batch = 4
    N = 32   # feature dim of the float input; output is [batch, N*B] = [4, 128]

    x = jax.random.uniform(key, (batch, N), dtype=jnp.float32)

    out = quantization_layer(x, B)
    out = jax.block_until_ready(out)

    ref = _reference(x, B)
    assert out.shape == (batch, N * B), out.shape
    assert jnp.array_equal(out, ref), (out, ref)

    print("KERNEL_OK")
</pallas_src>

<mosaic_0001>
module attributes {stable_mosaic.version = 11 : i64} {
  func.func @_quant_kernel(%arg0: i32, %arg1: memref<8x32xf32, #tpu.memory_space<vmem>>, %arg2: memref<4x8x32xf32, #tpu.memory_space<vmem>>) attributes {dimension_semantics = [#tpu.dimension_semantics<parallel>], iteration_bounds = array<i64: 1>, scalar_prefetch = 0 : i64, scratch_operands = 0 : i64, tpu.core_type = #tpu.core_type<tc>, window_params = [{transform_indices = @transform_0, window_bounds = array<i64: 8, 32>}, {transform_indices = @transform_1, window_bounds = array<i64: 4, 8, 32>}]} {
    %c0 = arith.constant 0 : index
    %c0_0 = arith.constant 0 : index
    %0 = vector.load %arg1[%c0, %c0_0] : memref<8x32xf32, #tpu.memory_space<vmem>>, vector<8x32xf32>
    %cst = arith.constant 1.600000e+01 : f32
    %1 = vector.broadcast %cst : f32 to vector<8x32xf32>
    %2 = arith.mulf %0, %1 : vector<8x32xf32>
    %cst_1 = arith.constant 5.000000e-01 : f32
    %3 = vector.broadcast %cst_1 : f32 to vector<8x32xf32>
    %4 = arith.subf %2, %3 : vector<8x32xf32>
    %5 = math.roundeven %4 : vector<8x32xf32>
    %6 = arith.fptosi %5 : vector<8x32xf32> to vector<8x32xi32>
    %c255_i32 = arith.constant 255 : i32
    %7 = vector.broadcast %c255_i32 : i32 to vector<8x32xi32>
    %8 = arith.andi %6, %7 : vector<8x32xi32>
    %c3_i32 = arith.constant 3 : i32
    %9 = vector.broadcast %c3_i32 : i32 to vector<8x32xi32>
    %10 = arith.shrsi %8, %9 : vector<8x32xi32>
    %c1_i32 = arith.constant 1 : i32
    %11 = vector.broadcast %c1_i32 : i32 to vector<8x32xi32>
    %12 = arith.andi %10, %11 : vector<8x32xi32>
    %13 = arith.sitofp %12 : vector<8x32xi32> to vector<8x32xf32>
    %c0_2 = arith.constant 0 : index
    %c0_3 = arith.constant 0 : index
    %c0_4 = arith.constant 0 : index
    %14 = vector.load %arg2[%c0_2, %c0_3, %c0_4] : memref<4x8x32xf32, #tpu.memory_space<vmem>>, vector<1x8x32xf32>
    %15 = vector.shape_cast %14 : vector<1x8x32xf32> to vector<8x32xf32>
    %16 = vector.shape_cast %13 : vector<8x32xf32> to vector<1x8x32xf32>
    tpu.vector_store %arg2[%c0_2, %c0_3, %c0_4], %16 {strides = array<i32>} : memref<4x8x32xf32, #tpu.memory_space<vmem>>, vector<1x8x32xf32>,
    %c2_i32 = arith.constant 2 : i32
    %17 = vector.broadcast %c2_i32 : i32 to vector<8x32xi32>
    %18 = arith.shrsi %8, %17 : vector<8x32xi32>
    %c1_i32_5 = arith.constant 1 : i32
    %19 = vector.broadcast %c1_i32_5 : i32 to vector<8x32xi32>
    %20 = arith.andi %18, %19 : vector<8x32xi32>
    %21 = arith.sitofp %20 : vector<8x32xi32> to vector<8x32xf32>
    %c1 = arith.constant 1 : index
    %c0_6 = arith.constant 0 : index
    %c0_7 = arith.constant 0 : index
    %22 = vector.load %arg2[%c1, %c0_6, %c0_7] : memref<4x8x32xf32, #tpu.memory_space<vmem>>, vector<1x8x32xf32>
    %23 = vector.shape_cast %22 : vector<1x8x32xf32> to vector<8x32xf32>
    %24 = vector.shape_cast %21 : vector<8x32xf32> to vector<1x8x32xf32>
    tpu.vector_store %arg2[%c1, %c0_6, %c0_7], %24 {strides = array<i32>} : memref<4x8x32xf32, #tpu.memory_space<vmem>>, vector<1x8x32xf32>,
    %c1_i32_8 = arith.constant 1 : i32
    %25 = vector.broadcast %c1_i32_8 : i32 to vector<8x32xi32>
    %26 = arith.shrsi %8, %25 : vector<8x32xi32>
    %c1_i32_9 = arith.constant 1 : i32
    %27 = vector.broadcast %c1_i32_9 : i32 to vector<8x32xi32>
    %28 = arith.andi %26, %27 : vector<8x32xi32>
    %29 = arith.sitofp %28 : vector<8x32xi32> to vector<8x32xf32>
    %c2 = arith.constant 2 : index
    %c0_10 = arith.constant 0 : index
    %c0_11 = arith.constant 0 : index
    %30 = vector.load %arg2[%c2, %c0_10, %c0_11] : memref<4x8x32xf32, #tpu.memory_space<vmem>>, vector<1x8x32xf32>
    %31 = vector.shape_cast %30 : vector<1x8x32xf32> to vector<8x32xf32>
    %32 = vector.shape_cast %29 : vector<8x32xf32> to vector<1x8x32xf32>
    tpu.vector_store %arg2[%c2, %c0_10, %c0_11], %32 {strides = array<i32>} : memref<4x8x32xf32, #tpu.memory_space<vmem>>, vector<1x8x32xf32>,
    %c0_i32 = arith.constant 0 : i32
    %33 = vector.broadcast %c0_i32 : i32 to vector<8x32xi32>
    %34 = arith.shrsi %8, %33 : vector<8x32xi32>
    %c1_i32_12 = arith.constant 1 : i32
    %35 = vector.broadcast %c1_i32_12 : i32 to vector<8x32xi32>
    %36 = arith.andi %34, %35 : vector<8x32xi32>
    %37 = arith.sitofp %36 : vector<8x32xi32> to vector<8x32xf32>
    %c3 = arith.constant 3 : index
    %c0_13 = arith.constant 0 : index
    %c0_14 = arith.constant 0 : index
    %38 = vector.load %arg2[%c3, %c0_13, %c0_14] : memref<4x8x32xf32, #tpu.memory_space<vmem>>, vector<1x8x32xf32>
    %39 = vector.shape_cast %38 : vector<1x8x32xf32> to vector<8x32xf32>
    %40 = vector.shape_cast %37 : vector<8x32xf32> to vector<1x8x32xf32>
    tpu.vector_store %arg2[%c3, %c0_13, %c0_14], %40 {strides = array<i32>} : memref<4x8x32xf32, #tpu.memory_space<vmem>>, vector<1x8x32xf32>,
    return
  }
  func.func @transform_0(%arg0: i32) -> (i32, i32) {
    %c0_i32 = arith.constant 0 : i32
    %c0_i32_0 = arith.constant 0 : i32
    return %arg0, %c0_i32 : i32, i32
  }
  func.func @transform_1(%arg0: i32) -> (i32, i32, i32) {
    %c0_i32 = arith.constant 0 : i32
    %c0_i32_0 = arith.constant 0 : i32
    %c0_i32_1 = arith.constant 0 : i32
    return %c0_i32, %arg0, %c0_i32_0 : i32, i32, i32
  }
}

</mosaic_0001>

<llo_original>
// kernel: tpu_custom_call.1
$region0: #{tpu_custom_call.1}
  #allocation0 [shape = 'u32[]', space=smem, size = 0x4, offset = 0x4, fixed_abs, tag = 'smem constant byte address 0x4 - core index']
  #allocation1 [shape = 'u32[144,128]{1,0:T(1,128)}', space=vmem, size = 0x12000, scoped, tag = 'internal scratch']
  %s0 = inlined_call_operand.hbm [shape: f32[8,32], index: 0, kind: input, shape index: {}]
  %s1 = inlined_call_operand.hbm [shape: f32[4,8,32], index: 1, kind: output, shape index: {}]
  %s2 = sld [smem:[#allocation0]]
  $region18: #{tpu_custom_call.1} parent=0
    _
  %s4 = ssub.s32 1, %s2
  %s5 = scalar_select 0, %s4, %s2
  $region1: #{tpu_custom_call.1} parent=0
    #allocation2 [shape = 'u8[4096]{0}', space=vmem, size = 0x1000, scoped, tag = 'input window, operand 0, single buffered']
    #allocation3 [shape = 's32[1]{0}', space=sflag, size = 0x4, scoped, tag = 'scoped memory for tpu_custom_call.1']
    #allocation4 [shape = 's32[1]{0}', space=sflag, size = 0x4, scoped, tag = 'scoped memory for tpu_custom_call.1']
    #allocation5 [shape = 'u8[16384]{0}', space=vmem, size = 0x4000, scoped, tag = 'output window, operand 0, single buffered']
    %6 = vsyncpa [#allocation3], 0
    %7 = vsyncpa [#allocation4], 0
    // Predicated region
    $region2: #{tpu_custom_call.1} parent=1 // pred_check
      _
    $region3: #{tpu_custom_call.1} parent=1 // pred_check_branch
      %9 = sbr.rel (0) target = $region5
    $region4: #{tpu_custom_call.1} parent=1 // pred_region
      %s11 = ssub.s32 128, 128
      %12 = vsyncadd [#allocation3], %s11
      %s14 = sshll.u32 [#allocation2], 4
      %s15 = int_to_ptr.vmem [resolvable:$true] %s14
      %17 = dma.hbm_to_vmem [thread:$0]  %s0, 128, %s15, [#allocation3]
    $region5: #{tpu_custom_call.1} parent=1 // pred_fallthru
      _
    // Predicated region
    $region6: #{tpu_custom_call.1} parent=1 // pred_check
      _
    $region7: #{tpu_custom_call.1} parent=1 // pred_check_branch
      %19 = sbr.rel (0) target = $region9
    $region8: #{tpu_custom_call.1} parent=1 // pred_region
      %20 = dma.done [#allocation3], 128
    $region9: #{tpu_custom_call.1} parent=1 // pred_fallthru
      _
    %v21 = vld [vmem:[#allocation2] sm:$0xff]
    %v22 = vmul.f32 %v21, 16.0
    %v23 = vsub.f32 %v22, 0.5
    %v24 = vcvt.f32.s32.ties.to.even %v23
    %v25 = vand.u32 %v24, 255
    %v26 = vshra.s32 %v25, 3
    %v27 = vand.u32 %v26, 1
    %v28 = vcvt.s32.f32 %v27
    %vm29 = vcmask 261120
    %30 = vst.msk [vmem:[#allocation5] sm:$0xff] %vm29, %v28
    %v31 = vshra.s32 %v25, 2
    %v32 = vand.u32 %v31, 1
    %v33 = vcvt.s32.f32 %v32
    %s34 = scalar_lea.vmem [#allocation5], 8
    %35 = vst.msk [vmem:[%s34] sm:$0xff] %vm29, %v33
    %v36 = vshra.s32 %v25, 1
    %v37 = vand.u32 %v36, 1
    %v38 = vcvt.s32.f32 %v37
    %s39 = scalar_lea.vmem [#allocation5], 16
    %40 = vst.msk [vmem:[%s39] sm:$0xff] %vm29, %v38
    %v41 = vand.u32 %v25, 1
    %v42 = vcvt.s32.f32 %v41
    %s43 = scalar_lea.vmem [#allocation5], 24
    %44 = vst.msk [vmem:[%s43] sm:$0xff] %vm29, %v42
    // Predicated region
    $region10: #{tpu_custom_call.1} parent=1 // pred_check
      _
    $region11: #{tpu_custom_call.1} parent=1 // pred_check_branch
      %46 = sbr.rel (0) target = $region13
    $region12: #{tpu_custom_call.1} parent=1 // pred_region
      %s48 = ssub.s32 512, 512
      %49 = vsyncadd [#allocation4], %s48
      %s50 = sshll.u32 [#allocation5], 4
      %s51 = int_to_ptr.vmem [resolvable:$true] %s50
      %56 = dma.vmem_to_hbm [thread:$0]  %s51, 512, %s1, [#allocation4], 128, 128, 8
    $region13: #{tpu_custom_call.1} parent=1 // pred_fallthru
      _
    // Predicated region
    $region14: #{tpu_custom_call.1} parent=1 // pred_check
      _
    $region15: #{tpu_custom_call.1} parent=1 // pred_check_branch
      %58 = sbr.rel (0) target = $region17
    $region16: #{tpu_custom_call.1} parent=1 // pred_region
      %59 = dma.done [#allocation4], 512
    $region17: #{tpu_custom_call.1} parent=1 // pred_fallthru
      _
    %60 = vsyncpa [#allocation3], 1
    %61 = vsyncpa [#allocation4], 1

</llo_original>
